<compile_context>
chip_gen: v5e
topology: v5e:2x2
jax: 0.10.0
libtpu: 0.0.40
codegen_flags: <defaults>
</compile_context>

<pallas_src>
import jax
import jax.numpy as jnp
from jax.experimental import pallas as pl
from jax.experimental.pallas import tpu as pltpu

HIDDEN = 12
_LANE = 128
_SUBLANE = 8


def _round_up(x, m):
    return ((x + m - 1) // m) * m


# ----------------------------------------------------------------------------
# Parameter packing (done once, at init)
# ----------------------------------------------------------------------------
def pack_actor_params(params):
    """Pack w1,b1,w2,b2,w3,b3 (PyTorch layout) into one lane-padded f32 slab.

    Column layout (per row-block of R sublane-aligned rows):
        [ w1 (R x S_pad) | b1 (R x 1) | w2 (R x R) | b2 | w3 (R x R) | b3 ]
    Contraction dims are zero-padded to sublane multiples so each in-kernel
    dot_general sees tile-aligned operands; zero rows/cols are mathematically
    inert (relu(0)=0, tanh rows beyond A are sliced off).
    """
    w1 = jnp.asarray(params["w1"], jnp.float32)  # (H, S)
    b1 = jnp.asarray(params["b1"], jnp.float32)  # (H,)
    w2 = jnp.asarray(params["w2"], jnp.float32)  # (H, H)
    b2 = jnp.asarray(params["b2"], jnp.float32)  # (H,)
    w3 = jnp.asarray(params["w3"], jnp.float32)  # (A, H)
    b3 = jnp.asarray(params["b3"], jnp.float32)  # (A,)

    H, S = w1.shape
    A = w3.shape[0]
    assert w2.shape == (H, H) and w3.shape == (A, H)
    assert b1.shape == (H,) and b2.shape == (H,) and b3.shape == (A,)

    S_pad = _round_up(S, _SUBLANE)
    R = _round_up(max(H, A), _SUBLANE)

    c_w1 = 0
    c_b1 = c_w1 + S_pad
    c_w2 = c_b1 + 1
    c_b2 = c_w2 + R
    c_w3 = c_b2 + 1
    c_b3 = c_w3 + R
    n_cols = c_b3 + 1
    C = _round_up(n_cols, _LANE)

    slab = jnp.zeros((R, C), jnp.float32)
    slab = slab.at[:H, c_w1:c_w1 + S].set(w1)
    slab = slab.at[:H, c_b1].set(b1)
    slab = slab.at[:H, c_w2:c_w2 + H].set(w2)
    slab = slab.at[:H, c_b2].set(b2)
    slab = slab.at[:A, c_w3:c_w3 + H].set(w3)
    slab = slab.at[:A, c_b3].set(b3)

    offsets = dict(c_w1=c_w1, c_b1=c_b1, c_w2=c_w2, c_b2=c_b2,
                   c_w3=c_w3, c_b3=c_b3)
    dims = dict(S=S, H=H, A=A, S_pad=S_pad, R=R, C=C)
    return slab, offsets, dims


# ----------------------------------------------------------------------------
# Kernel
# ----------------------------------------------------------------------------
def _make_kernel(dims, off):
    """Fused 3-layer MLP, transposed activations (features x batch_tile)."""
    S_pad, R, A = dims["S_pad"], dims["R"], dims["A"]
    c_w1, c_w2, c_w3 = off["c_w1"], off["c_w2"], off["c_w3"]

    def layer(p, h, c_w, k):
        # y = W @ h + b on the MXU: W (R, k), h (k, Tb), b (R, 1).
        w = p[:, c_w:c_w + k]
        b = p[:, c_w + k:c_w + k + 1]
        y = jax.lax.dot_general(w, h, (((1,), (0,)), ((), ())),
                                preferred_element_type=jnp.float32)
        return y + b

    def kernel(x_ref, p_ref, o_ref):
        x = x_ref[...]          # (S_pad, Tb)  f32, batch on lanes
        p = p_ref[...]          # (R, C)       packed param slab (resident)

        h = jnp.maximum(layer(p, x, c_w1, S_pad), 0.0)   # (R, Tb)
        h = jnp.maximum(layer(p, h, c_w2, R), 0.0)       # (R, Tb)
        y = jnp.tanh(layer(p, h, c_w3, R))               # (R, Tb)
        o_ref[...] = y[:A, :].astype(o_ref.dtype)        # (A, Tb) lane-dense

    return kernel


# ----------------------------------------------------------------------------
# Wrapper
# ----------------------------------------------------------------------------
class PallasActor:
    """Actor.forward(state) -> action in [-1, 1] (Pallas TPU implementation)."""

    def __init__(self, params, *, max_tile_b=16384, single_step_lanes=2048,
                 min_pallas_batch=1024):
        # Pack parameters once (hoisted out of the per-call path).
        self.slab, self.off, self.dims = pack_actor_params(params)
        self.max_tile_b = int(max_tile_b)
        self.single_step_lanes = int(single_step_lanes)
        self.min_pallas_batch = int(min_pallas_batch)

        S, H, A = self.dims["S"], self.dims["H"], self.dims["A"]
        S_pad, R, C = self.dims["S_pad"], self.dims["R"], self.dims["C"]
        off = self.off
        kernel = _make_kernel(self.dims, off)

        def _pallas_fwd(state, slab):
            x = jnp.asarray(state, jnp.float32)
            batch = x.shape[0]

            # Static (trace-time) tile selection.
            lanes = _round_up(max(batch, 1), _LANE)
            if lanes <= self.single_step_lanes:
                tile_b = lanes                      # one grid step
            else:
                # >=2 grid steps so "parallel" shards across v7x's 2 TCs.
                tile_b = min(self.max_tile_b,
                             _round_up(pl.cdiv(lanes, 2), _LANE))
            padded = _round_up(max(batch, 1), tile_b)

            # Fused (under jit) cast + transpose + zero-pad: batch -> lanes.
            xT = jnp.zeros((S_pad, padded), jnp.float32)
            xT = xT.at[:S, :batch].set(x.T)

            flops = 2 * padded * (S_pad * R + R * R + R * R)
            cost = pl.CostEstimate(
                flops=int(flops),
                transcendentals=int(padded * R),
                bytes_accessed=int(4 * (padded * (S_pad + A) + R * C)),
            )

            grid_spec = pltpu.PrefetchScalarGridSpec(
                num_scalar_prefetch=0,
                grid=(padded // tile_b,),
                in_specs=[
                    pl.BlockSpec((S_pad, tile_b), lambda i: (0, i)),  # state^T
                    pl.BlockSpec((R, C), lambda i: (0, 0)),           # params
                ],
                out_specs=pl.BlockSpec((A, tile_b), lambda i: (0, i)),
            )

            outT = pl.pallas_call(
                kernel,
                out_shape=jax.ShapeDtypeStruct((A, padded), jnp.float32),
                grid_spec=grid_spec,
                compiler_params=pltpu.CompilerParams(
                    dimension_semantics=("parallel",)),
                cost_estimate=cost,
            )(xT, slab)

            return outT[:, :batch].T

        def _xla_fwd(state, slab):
            # Fused plain-XLA path for tiny policy-query batches.
            x = jnp.asarray(state, jnp.float32)
            w1 = slab[:H, off["c_w1"]:off["c_w1"] + S]
            b1 = slab[:H, off["c_b1"]]
            w2 = slab[:H, off["c_w2"]:off["c_w2"] + H]
            b2 = slab[:H, off["c_b2"]]
            w3 = slab[:A, off["c_w3"]:off["c_w3"] + H]
            b3 = slab[:A, off["c_b3"]]
            h = jnp.maximum(x @ w1.T + b1, 0.0)
            h = jnp.maximum(h @ w2.T + b2, 0.0)
            return jnp.tanh(h @ w3.T + b3)

        self._pallas_fwd = jax.jit(_pallas_fwd)
        self._xla_fwd = jax.jit(_xla_fwd)

    # Always runs the Pallas kernel (used by tests / large batches).
    def forward_pallas(self, state):
        return self._pallas_fwd(state, self.slab)

    # Fused plain-XLA path (used by the dispatcher for tiny batches).
    def forward_reference(self, state):
        return self._xla_fwd(state, self.slab)

    def __call__(self, state):
        state = jnp.asarray(state, jnp.float32)
        squeeze = state.ndim == 1
        if squeeze:
            state = state[None, :]
        if state.shape[0] < self.min_pallas_batch:
            out = self._xla_fwd(state, self.slab)
        else:
            out = self._pallas_fwd(state, self.slab)
        return out[0] if squeeze else out


# ----------------------------------------------------------------------------
# Pure-JAX reference (same math as torch's x @ W.T + b) and init
# ----------------------------------------------------------------------------
def actor_forward_ref(state, params):
    x = jnp.asarray(state, jnp.float32)
    h = jnp.maximum(x @ params["w1"].T + params["b1"], 0.0)
    h = jnp.maximum(h @ params["w2"].T + params["b2"], 0.0)
    return jnp.tanh(h @ params["w3"].T + params["b3"])


def init_actor_params(key, state_dim, action_dim, hidden=HIDDEN):
    """PyTorch-style init: U(-1/sqrt(fan_in), 1/sqrt(fan_in)), torch layout."""
    dims = [(hidden, state_dim), (hidden, hidden), (action_dim, hidden)]
    params = {}
    for i, (fan_out, fan_in) in enumerate(dims, start=1):
        key, kw, kb = jax.random.split(key, 3)
        bound = 1.0 / (fan_in ** 0.5)
        params[f"w{i}"] = jax.random.uniform(
            kw, (fan_out, fan_in), jnp.float32, minval=-bound, maxval=bound)
        params[f"b{i}"] = jax.random.uniform(
            kb, (fan_out,), jnp.float32, minval=-bound, maxval=bound)
    return params


if __name__ == "__main__":
    # MountainCarContinuous-v0: state_dim=2, action_dim=1.
    state_dim, action_dim = 2, 1

    key = jax.random.PRNGKey(0)
    key, k_p, k_small, k_big = jax.random.split(key, 4)
    params = init_actor_params(k_p, state_dim, action_dim)

    actor = PallasActor(params)

    # Small batch through the Pallas kernel (single grid step).
    s_small = jax.random.normal(k_small, (8, state_dim), dtype=jnp.float32)
    out_small = jax.block_until_ready(actor.forward_pallas(s_small))
    ref_small = actor_forward_ref(s_small, params)
    assert out_small.shape == (8, action_dim)
    assert jnp.allclose(out_small, ref_small, atol=1e-5, rtol=1e-5), "small-batch mismatch"

    # Larger batch: 2 grid steps -> pipelined, megacore-parallel on v7x.
    s_big = jax.random.normal(k_big, (2560, state_dim), dtype=jnp.float32)
    out_big = jax.block_until_ready(actor.forward_pallas(s_big))
    ref_big = actor_forward_ref(s_big, params)
    assert out_big.shape == (2560, action_dim)
    assert jnp.allclose(out_big, ref_big, atol=1e-5, rtol=1e-5), "big-batch mismatch"

    # Dispatcher: tiny batches use the fused XLA path, big batches use Pallas.
    out_disp_small = jax.block_until_ready(actor(s_small))
    out_disp_big = jax.block_until_ready(actor(s_big))
    assert jnp.allclose(out_disp_small, ref_small, atol=1e-5, rtol=1e-5)
    assert jnp.allclose(out_disp_big, ref_big, atol=1e-5, rtol=1e-5)

    print("KERNEL_OK")
</pallas_src>

<mosaic_0001>
module attributes {stable_mosaic.version = 11 : i64} {
  func.func @kernel(%arg0: i32, %arg1: memref<8x128xf32, #tpu.memory_space<vmem>>, %arg2: memref<16x128xf32, #tpu.memory_space<vmem>>, %arg3: memref<1x128xf32, #tpu.memory_space<vmem>>) attributes {dimension_semantics = [#tpu.dimension_semantics<parallel>], iteration_bounds = array<i64: 1>, scalar_prefetch = 0 : i64, scratch_operands = 0 : i64, tpu.core_type = #tpu.core_type<tc>, window_params = [{transform_indices = @transform_0, window_bounds = array<i64: 8, 128>}, {pipeline_mode = #tpu.pipeline_mode<synchronous>, transform_indices = @transform_1, window_bounds = array<i64: 16, 128>}, {transform_indices = @transform_2, window_bounds = array<i64: 1, 128>}]} {
    %c0 = arith.constant 0 : index
    %c0_0 = arith.constant 0 : index
    %0 = vector.load %arg1[%c0, %c0_0] : memref<8x128xf32, #tpu.memory_space<vmem>>, vector<8x128xf32>
    %c0_1 = arith.constant 0 : index
    %c0_2 = arith.constant 0 : index
    %1 = vector.load %arg2[%c0_1, %c0_2] : memref<16x128xf32, #tpu.memory_space<vmem>>, vector<16x128xf32>
    %2 = vector.extract_strided_slice %1 {offsets = [0, 0], sizes = [16, 8], strides = [1, 1]} : vector<16x128xf32> to vector<16x8xf32>
    %3 = vector.extract_strided_slice %1 {offsets = [0, 8], sizes = [16, 1], strides = [1, 1]} : vector<16x128xf32> to vector<16x1xf32>
    %cst = arith.constant dense<0.000000e+00> : vector<16x128xf32>
    %4 = tpu.matmul %2, %0, %cst {dimension_numbers = #tpu.dot_dimension_numbers<[1], [0], [0], [1], [0, 0, 1, 1], [], []>} : vector<16x8xf32>, vector<8x128xf32>, vector<16x128xf32> -> vector<16x128xf32>
    %5 = vector.broadcast %3 : vector<16x1xf32> to vector<16x128xf32>
    %6 = arith.addf %4, %5 : vector<16x128xf32>
    %cst_3 = arith.constant 0.000000e+00 : f32
    %7 = vector.broadcast %cst_3 : f32 to vector<16x128xf32>
    %8 = arith.maximumf %6, %7 : vector<16x128xf32>
    %9 = vector.extract_strided_slice %1 {offsets = [0, 9], sizes = [16, 16], strides = [1, 1]} : vector<16x128xf32> to vector<16x16xf32>
    %10 = vector.extract_strided_slice %1 {offsets = [0, 25], sizes = [16, 1], strides = [1, 1]} : vector<16x128xf32> to vector<16x1xf32>
    %cst_4 = arith.constant dense<0.000000e+00> : vector<16x128xf32>
    %11 = tpu.matmul %9, %8, %cst_4 {dimension_numbers = #tpu.dot_dimension_numbers<[1], [0], [0], [1], [0, 0, 1, 1], [], []>} : vector<16x16xf32>, vector<16x128xf32>, vector<16x128xf32> -> vector<16x128xf32>
    %12 = vector.broadcast %10 : vector<16x1xf32> to vector<16x128xf32>
    %13 = arith.addf %11, %12 : vector<16x128xf32>
    %cst_5 = arith.constant 0.000000e+00 : f32
    %14 = vector.broadcast %cst_5 : f32 to vector<16x128xf32>
    %15 = arith.maximumf %13, %14 : vector<16x128xf32>
    %16 = vector.extract_strided_slice %1 {offsets = [0, 26], sizes = [16, 16], strides = [1, 1]} : vector<16x128xf32> to vector<16x16xf32>
    %17 = vector.extract_strided_slice %1 {offsets = [0, 42], sizes = [16, 1], strides = [1, 1]} : vector<16x128xf32> to vector<16x1xf32>
    %cst_6 = arith.constant dense<0.000000e+00> : vector<16x128xf32>
    %18 = tpu.matmul %16, %15, %cst_6 {dimension_numbers = #tpu.dot_dimension_numbers<[1], [0], [0], [1], [0, 0, 1, 1], [], []>} : vector<16x16xf32>, vector<16x128xf32>, vector<16x128xf32> -> vector<16x128xf32>
    %19 = vector.broadcast %17 : vector<16x1xf32> to vector<16x128xf32>
    %20 = arith.addf %18, %19 : vector<16x128xf32>
    %21 = math.tanh %20 : vector<16x128xf32>
    %22 = vector.extract_strided_slice %21 {offsets = [0, 0], sizes = [1, 128], strides = [1, 1]} : vector<16x128xf32> to vector<1x128xf32>
    %c0_7 = arith.constant 0 : index
    %c0_8 = arith.constant 0 : index
    %23 = vector.load %arg3[%c0_7, %c0_8] : memref<1x128xf32, #tpu.memory_space<vmem>>, vector<1x128xf32>
    tpu.vector_store %arg3[%c0_7, %c0_8], %22 {strides = array<i32>} : memref<1x128xf32, #tpu.memory_space<vmem>>, vector<1x128xf32>,
    return
  }
  func.func @transform_0(%arg0: i32) -> (i32, i32) {
    %c0_i32 = arith.constant 0 : i32
    %c0_i32_0 = arith.constant 0 : i32
    return %c0_i32, %arg0 : i32, i32
  }
  func.func @transform_1(%arg0: i32) -> (i32, i32) {
    %c0_i32 = arith.constant 0 : i32
    %c0_i32_0 = arith.constant 0 : i32
    %c0_i32_1 = arith.constant 0 : i32
    return %c0_i32, %c0_i32_0 : i32, i32
  }
  func.func @transform_2(%arg0: i32) -> (i32, i32) {
    %c0_i32 = arith.constant 0 : i32
    %c0_i32_0 = arith.constant 0 : i32
    return %c0_i32, %arg0 : i32, i32
  }
}

</mosaic_0001>

<llo_original>
// kernel: _pallas_fwd.1
$region0: #{_pallas_fwd.1}
  #allocation0 [shape = 'u32[]', space=smem, size = 0x4, offset = 0x4, fixed_abs, tag = 'smem constant byte address 0x4 - core index']
  #allocation1 [shape = 'u32[72,128]{1,0:T(1,128)}', space=vmem, size = 0x9000, scoped, tag = 'internal scratch']
  %s0 = inlined_call_operand.vmem [shape: f32[8,128], index: 0, kind: input, shape index: {}]
  %s1 = inlined_call_operand.hbm [shape: f32[16,128], index: 1, kind: input, shape index: {}]
  %s2 = inlined_call_operand.vmem [shape: f32[1,128], index: 2, kind: output, shape index: {}]
  %s3 = sld [smem:[#allocation0]]
  $region22: #{_pallas_fwd.1} parent=0
    _
  %s5 = ssub.s32 1, %s3
  %s6 = scalar_select 0, %s5, %s3
  $region1: #{_pallas_fwd.1} parent=0
    #allocation2 [shape = 'u8[8192]{0}', space=vmem, size = 0x2000, scoped, tag = 'input window, operand 1, single buffered']
    #allocation3 [shape = 's32[1]{0}', space=sflag, size = 0x4, scoped, tag = 'scoped memory for _pallas_fwd.1']
    %7 = vsyncpa [#allocation3], 0
    // Predicated region
    $region2: #{_pallas_fwd.1} parent=1 // pred_check
      _
    $region3: #{_pallas_fwd.1} parent=1 // pred_check_branch
      %9 = sbr.rel (0) target = $region5
    $region4: #{_pallas_fwd.1} parent=1 // pred_region
      _
    $region5: #{_pallas_fwd.1} parent=1 // pred_fallthru
      _
    // Predicated region
    $region6: #{_pallas_fwd.1} parent=1 // pred_check
      _
    $region7: #{_pallas_fwd.1} parent=1 // pred_check_branch
      %11 = sbr.rel (0) target = $region9
    $region8: #{_pallas_fwd.1} parent=1 // pred_region
      %13 = vsyncadd [#allocation3], 0
      %s14 = sshll.u32 %s1, 4
      %s15 = int_to_ptr.hbm [resolvable:$true] %s14
      %s16 = sshll.u32 [#allocation2], 4
      %s17 = int_to_ptr.vmem [resolvable:$true] %s16
      %22 = dma.hbm_to_vmem [thread:$0]  %s15, 256, %s17, [#allocation3], 128, 128, 8
    $region9: #{_pallas_fwd.1} parent=1 // pred_fallthru
      _
    // Predicated region
    $region10: #{_pallas_fwd.1} parent=1 // pred_check
      _
    $region11: #{_pallas_fwd.1} parent=1 // pred_check_branch
      %24 = sbr.rel (0) target = $region13
    $region12: #{_pallas_fwd.1} parent=1 // pred_region
      %26 = dma.done [#allocation3], 256
    $region13: #{_pallas_fwd.1} parent=1 // pred_fallthru
      _
    %v27 = vld [vmem:[%s0] sm:$0xff]
    %v28 = vld [vmem:[#allocation2] sm:$0xff]
    %v29 = vld [vmem:[#allocation2 + $0x8] sm:$0xff]
    %31 = vset.pattern.permute.xlu0 8
    %32 = vperm.xlu0 %31, %v28
    %v33 = vpop.permute.xlu0 %32
    %36 = vset.pattern.permute.xlu0 8
    %37 = vperm.xlu0 %36, %v29
    %v38 = vpop.permute.xlu0 %37
    %vm40 = vcmask 64512
    %v41 = vsel %vm40, %v28, 0
    %v43 = vsel %vm40, %v29, 0
    %45 = vmatpush.msra.mxu0 0.0
    %46 = vmatpush.msra.mxu0 0.0
    %47 = vmatpush.msra.mxu0 0.0
    %48 = vmatpush.msra.mxu0 0.0
    %49 = vmatpush.msra.mxu0 0.0
    %50 = vmatpush.msra.mxu0 0.0
    %51 = vmatpush.msra.mxu0 0.0
    %52 = vmatpush.msra.mxu0 0.0
    %53 = vmatpush.msra.mxu0 0.0
    %54 = vmatpush.msra.mxu0 0.0
    %55 = vmatpush.msra.mxu0 0.0
    %56 = vmatpush.msra.mxu0 0.0
    %57 = vmatpush.msra.mxu0 0.0
    %58 = vmatpush.msra.mxu0 0.0
    %59 = vmatpush.msra.mxu0 0.0
    %60 = vmatpush.msra.mxu0 %v27
    %61 = vmatmul.f32.gmra.mxu0 %v41
    %v62 = vpop.f32.mrf.mxu0
    %v63 = vadd.f32 %v33, %v62
    %64 = vmatmul.f32.gmra.mxu0 %v43
    %v65 = vpop.f32.mrf.mxu0
    %v66 = vadd.f32 %v38, %v65
    %67 = vdwg.mxu0
    %v68 = vmax.f32 %v63, 0.0
    %v69 = vmax.f32 %v66, 0.0
    %70 = vset.pattern.permute.xlu0 25
    %71 = vperm.xlu0 %70, %v28
    %v72 = vpop.permute.xlu0 %71
    %74 = vset.pattern.permute.xlu0 25
    %75 = vperm.xlu0 %74, %v29
    %v76 = vpop.permute.xlu0 %75
    %78 = vrot.lane.b32.xlu0 %v28, 119
    %v79 = vpop.permute.xlu0 %78
    %80 = vrot.lane.b32.xlu0 %v29, 119
    %v81 = vpop.permute.xlu0 %80
    %vm82 = vcmask 130048
    %v83 = vsel %vm82, %v79, 0
    %v85 = vsel %vm82, %v81, 0
    %87 = vmatpush.msra.mxu0 0.0
    %88 = vmatpush.msra.mxu0 0.0
    %89 = vmatpush.msra.mxu0 0.0
    %90 = vmatpush.msra.mxu0 0.0
    %91 = vmatpush.msra.mxu0 0.0
    %92 = vmatpush.msra.mxu0 0.0
    %93 = vmatpush.msra.mxu0 0.0
    %94 = vmatpush.msra.mxu0 0.0
    %95 = vmatpush.msra.mxu0 0.0
    %96 = vmatpush.msra.mxu0 0.0
    %97 = vmatpush.msra.mxu0 0.0
    %98 = vmatpush.msra.mxu0 0.0
    %99 = vmatpush.msra.mxu0 0.0
    %100 = vmatpush.msra.mxu0 0.0
    %101 = vmatpush.msra.mxu0 %v69
    %102 = vmatpush.msra.mxu0 %v68
    %103 = vmatmul.f32.gmra.mxu0 %v83
    %v104 = vpop.f32.mrf.mxu0
    %v105 = vadd.f32 %v72, %v104
    %106 = vmatmul.f32.gmra.mxu0 %v85
    %v107 = vpop.f32.mrf.mxu0
    %v108 = vadd.f32 %v76, %v107
    %109 = vdwg.mxu0
    %v110 = vmax.f32 %v105, 0.0
    %v111 = vmax.f32 %v108, 0.0
    %112 = vset.pattern.permute.xlu0 42
    %113 = vperm.xlu0 %112, %v28
    %v114 = vpop.permute.xlu0 %113
    %116 = vset.pattern.permute.xlu0 42
    %117 = vperm.xlu0 %116, %v29
    %v118 = vpop.permute.xlu0 %117
    %119 = vrot.lane.b32.xlu0 %v28, 102
    %v120 = vpop.permute.xlu0 %119
    %121 = vrot.lane.b32.xlu0 %v29, 102
    %v122 = vpop.permute.xlu0 %121
    %v123 = vsel %vm82, %v120, 0
    %v125 = vsel %vm82, %v122, 0
    %127 = vmatpush.msra.mxu0 0.0
    %128 = vmatpush.msra.mxu0 0.0
    %129 = vmatpush.msra.mxu0 0.0
    %130 = vmatpush.msra.mxu0 0.0
    %131 = vmatpush.msra.mxu0 0.0
    %132 = vmatpush.msra.mxu0 0.0
    %133 = vmatpush.msra.mxu0 0.0
    %134 = vmatpush.msra.mxu0 0.0
    %135 = vmatpush.msra.mxu0 0.0
    %136 = vmatpush.msra.mxu0 0.0
    %137 = vmatpush.msra.mxu0 0.0
    %138 = vmatpush.msra.mxu0 0.0
    %139 = vmatpush.msra.mxu0 0.0
    %140 = vmatpush.msra.mxu0 0.0
    %141 = vmatpush.msra.mxu0 %v111
    %142 = vmatpush.msra.mxu0 %v110
    %143 = vmatmul.f32.gmra.mxu0 %v123
    %v144 = vpop.f32.mrf.mxu0
    %v145 = vadd.f32 %v114, %v144
    %146 = vmatmul.f32.gmra.mxu0 %v125
    %v147 = vpop.f32.mrf.mxu0
    %148 = vdwg.mxu0
    %v149 = vtanh.pop %v145
    %150 = vst [vmem:[%s2] sm:$0x1] %v149
    // Predicated region
    $region14: #{_pallas_fwd.1} parent=1 // pred_check
      _
    $region15: #{_pallas_fwd.1} parent=1 // pred_check_branch
      %152 = sbr.rel (0) target = $region17
    $region16: #{_pallas_fwd.1} parent=1 // pred_region
      _
    $region17: #{_pallas_fwd.1} parent=1 // pred_fallthru
      _
    // Predicated region
    $region18: #{_pallas_fwd.1} parent=1 // pred_check
      _
    $region19: #{_pallas_fwd.1} parent=1 // pred_check_branch
      %154 = sbr.rel (0) target = $region21
    $region20: #{_pallas_fwd.1} parent=1 // pred_region
      _
    $region21: #{_pallas_fwd.1} parent=1 // pred_fallthru
      _
    %155 = vsyncpa [#allocation3], 1

</llo_original>
